<compile_context>
chip_gen: v7x
topology: tpu7x:2x2x1
jax: 0.10.0
libtpu: 0.0.40
codegen_flags: <defaults>
</compile_context>

<pallas_src>
import functools

import jax
import jax.numpy as jnp
from jax.experimental import pallas as pl
from jax.experimental.pallas import tpu as pltpu

LANE = 128                     # vreg lane width: keep the last dim lane-dense.
_MIN_PALLAS_ELEMS = 8 * LANE   # below this, a pure-XLA fusion is faster.
_CHUNK_ROWS = 512              # inner-loop chunk: keeps live values ~<1 MiB.


def _round_up(x, m):
    return (x + m - 1) // m * m


def _cdiv(a, b):
    return (a + b - 1) // b


def _partial_sq_sums(load_pair, nrows, chunk, mask=None):
    """Lane-wise (1, 128) sum of squared differences over `nrows` rows.

    load_pair(r0, n) returns the two (n, 128) f32 operand slices starting at
    local row r0.  `mask`, if given, is (base_row, limit_rows): rows whose
    global index base_row + local_row >= limit_rows contribute 0 (applied to
    the difference BEFORE squaring so padded garbage/NaN cannot leak in).
    The reduction is chunked so Mosaic never materializes multi-MiB values.
    """
    def one(r0, n):
        a, b = load_pair(r0, n)
        d = a - b
        if mask is not None:
            base_row, limit = mask
            row = jax.lax.broadcasted_iota(jnp.int32, (n, LANE), 0) + base_row + r0
            d = jnp.where(row < limit, d, 0.0)
        return jnp.sum(d * d, axis=0, keepdims=True)

    nfull = nrows // chunk
    rem = nrows - nfull * chunk
    acc = jnp.zeros((1, LANE), jnp.float32)
    if nfull > 0:
        acc = jax.lax.fori_loop(0, nfull,
                                lambda c, s: s + one(c * chunk, chunk), acc)
    if rem > 0:
        acc = acc + one(nfull * chunk, rem)
    return acc


def _shifted_mse_kernel(x_ref, o_ref, *, tm, q, count_rows, chunk):
    """Single-read kernel: pairs (row r, row r+q) fully inside a (tm,128) tile."""
    i = pl.program_id(0)
    is_last = i == pl.num_programs(0) - 1
    nrows = tm - q  # rows whose shifted partner also lives inside this tile

    def load_pair(r0, n):
        a = x_ref[pl.ds(r0, n), :].astype(jnp.float32)
        b = x_ref[pl.ds(r0 + q, n), :].astype(jnp.float32)
        return a, b

    @pl.when(jnp.logical_not(is_last))
    def _():
        o_ref[...] = _partial_sq_sums(load_pair, nrows, chunk)

    @pl.when(is_last)
    def _():
        # Only the last tile can contain out-of-range (padded) rows.
        o_ref[...] = _partial_sq_sums(load_pair, nrows, chunk,
                                      mask=(i * tm, count_rows))


def _pair_mse_kernel(a_ref, b_ref, o_ref, *, tm, rows, chunk):
    """Fallback kernel: two pre-sliced operands, same tiling / masking."""
    i = pl.program_id(0)
    is_last = i == pl.num_programs(0) - 1

    def load_pair(r0, n):
        return (a_ref[pl.ds(r0, n), :].astype(jnp.float32),
                b_ref[pl.ds(r0, n), :].astype(jnp.float32))

    @pl.when(jnp.logical_not(is_last))
    def _():
        o_ref[...] = _partial_sq_sums(load_pair, tm, chunk)

    @pl.when(is_last)
    def _():
        o_ref[...] = _partial_sq_sums(load_pair, tm, chunk, mask=(i * tm, rows))


def _aligned_single_read(x2d, q, count_rows, count, tm, chunk):
    """Read state exactly once; each tile handles its interior shifted pairs."""
    s_rows = x2d.shape[0]
    num_tiles = _cdiv(count_rows, tm)
    kernel = functools.partial(_shifted_mse_kernel, tm=tm, q=q,
                               count_rows=count_rows, chunk=chunk)
    itemsize = jnp.dtype(x2d.dtype).itemsize

    partials = pl.pallas_call(
        kernel,
        out_shape=jax.ShapeDtypeStruct((num_tiles, LANE), jnp.float32),
        grid_spec=pltpu.PrefetchScalarGridSpec(
            num_scalar_prefetch=0,
            grid=(num_tiles,),
            in_specs=[pl.BlockSpec((tm, LANE), lambda i: (i, 0))],
            out_specs=pl.BlockSpec((1, LANE), lambda i: (i, 0)),
        ),
        compiler_params=pltpu.CompilerParams(
            dimension_semantics=("parallel",),
            vmem_limit_bytes=32 * 1024 * 1024,
        ),
        cost_estimate=pl.CostEstimate(
            flops=3 * count,
            transcendentals=0,
            bytes_accessed=int(x2d.size) * itemsize + num_tiles * LANE * 4,
        ),
    )(x2d)

    # Seam cleanup: the q rows per tile whose partner row lives in the next
    # tile.  num_tiles * q * 128 elements -- a tiny fraction of the input by
    # construction (4*q <= tm gate) -- summed in plain JAX.
    tiles = jnp.arange(num_tiles, dtype=jnp.int32)
    seam_rows = (tiles[:, None] * tm + (tm - q)
                 + jnp.arange(q, dtype=jnp.int32)[None, :]).reshape(-1)
    valid = seam_rows < count_rows
    a_idx = jnp.minimum(seam_rows, s_rows - 1)
    b_idx = jnp.minimum(seam_rows + q, s_rows - 1)
    sd = jnp.where(valid[:, None],
                   x2d[a_idx].astype(jnp.float32) - x2d[b_idx].astype(jnp.float32),
                   0.0)
    total_sum = jnp.sum(partials) + jnp.sum(sd * sd)
    return total_sum / count


def _pair_read(a_flat, b_flat, count, block_rows, chunk):
    """Fallback: stream the two shifted views (zero-padded to 128 lanes)."""
    # This path materializes the slices (~2x the aligned path's HBM traffic);
    # it is only taken for layouts the single-read kernel rejects.
    pad = (-count) % LANE
    if pad:
        z = jnp.zeros((pad,), a_flat.dtype)
        a_flat = jnp.concatenate([a_flat, z])
        b_flat = jnp.concatenate([b_flat, z])
    rows = (count + pad) // LANE
    a2 = a_flat.reshape(rows, LANE)
    b2 = b_flat.reshape(rows, LANE)

    tm = min(block_rows, _round_up(rows, 8))
    chunk = min(chunk, tm)
    num_tiles = _cdiv(rows, tm)
    kernel = functools.partial(_pair_mse_kernel, tm=tm, rows=rows, chunk=chunk)
    itemsize = jnp.dtype(a2.dtype).itemsize

    partials = pl.pallas_call(
        kernel,
        out_shape=jax.ShapeDtypeStruct((num_tiles, LANE), jnp.float32),
        grid_spec=pltpu.PrefetchScalarGridSpec(
            num_scalar_prefetch=0,
            grid=(num_tiles,),
            in_specs=[pl.BlockSpec((tm, LANE), lambda i: (i, 0)),
                      pl.BlockSpec((tm, LANE), lambda i: (i, 0))],
            out_specs=pl.BlockSpec((1, LANE), lambda i: (i, 0)),
        ),
        compiler_params=pltpu.CompilerParams(
            dimension_semantics=("parallel",),
            vmem_limit_bytes=32 * 1024 * 1024,
        ),
        cost_estimate=pl.CostEstimate(
            flops=3 * count,
            transcendentals=0,
            bytes_accessed=2 * rows * LANE * itemsize + num_tiles * LANE * 4,
        ),
    )(a2, b2)
    return jnp.sum(partials) / count


def state_prediction_loss(state, tau=1, *, block_rows=8192):
    """MSE(state[:-tau], state[tau:]), reduction='mean' (StatePredictionLoss)."""
    # Match the original module exactly: assert on dim 1, slice along dim 0.
    assert state.shape[1] > tau, (
        "The sequence length is shorter than the prediction window.")

    total = int(state.size)
    shift = tau * (total // state.shape[0])   # tau * prod(shape[1:])
    count = total - shift
    if count <= 0:
        return jnp.float32(jnp.nan)           # mean over an empty slice

    flat = state.reshape(-1)

    # Tiny inputs: pallas_call dispatch + epilogue dominate; let XLA fuse it.
    if count < _MIN_PALLAS_ELEMS:
        a = flat[:count].astype(jnp.float32)
        b = flat[shift:].astype(jnp.float32)
        d = a - b
        return jnp.sum(d * d) / count

    block_rows = _round_up(max(int(block_rows), 8), 8)
    chunk = min(_CHUNK_ROWS, block_rows)

    # Aligned single-read path: both views live in one buffer offset by
    # `shift`.  If everything is 128-lane aligned and the row shift q is a
    # small fraction of the tile, every byte is read from HBM exactly once.
    if total % LANE == 0 and shift % LANE == 0:
        q = shift // LANE
        s_rows = total // LANE
        count_rows = s_rows - q
        tm = min(block_rows, _round_up(count_rows, 8))
        if 4 * q <= tm:
            x2d = flat.reshape(s_rows, LANE)   # contiguous reshape: no copy
            return _aligned_single_read(x2d, q, count_rows, count, tm,
                                        min(chunk, tm))

    return _pair_read(flat[:count], flat[shift:], count, block_rows, chunk)


if __name__ == "__main__":
    key = jax.random.PRNGKey(0)
    k0, k1 = jax.random.split(key)

    def ref_loss(s, tau):
        a = s[:-tau].astype(jnp.float32)
        b = s[tau:].astype(jnp.float32)
        return jnp.mean((a - b) ** 2)

    B, T, N = 8, 16, 32
    state = jax.random.normal(k0, (B, T, N), dtype=jnp.float32)

    results = []
    # 1) Default config: aligned single-read path, single tile.
    results.append((state_prediction_loss(state, tau=1), ref_loss(state, 1)))
    # 2) Tiny tiles: exercises the multi-tile grid, the seam cleanup and the
    #    pl.when-gated last-tile mask of the aligned path.
    results.append((state_prediction_loss(state, tau=1, block_rows=16),
                    ref_loss(state, 1)))
    # 3) Larger shift (tau=3) routes through the two-operand fallback kernel.
    results.append((state_prediction_loss(state, tau=3), ref_loss(state, 3)))
    # 4) Feature dim not 128-lane aligned: fallback with zero-padded views.
    state_m = jax.random.normal(k1, (8, 16, 20), dtype=jnp.float32)
    results.append((state_prediction_loss(state_m, tau=1), ref_loss(state_m, 1)))

    outs = jax.block_until_ready([r[0] for r in results])
    for got, want in zip(outs, [r[1] for r in results]):
        assert jnp.allclose(got, want, rtol=1e-5, atol=1e-6), (got, want)

    print("KERNEL_OK")
</pallas_src>

<mosaic_0001>
module attributes {stable_mosaic.version = 11 : i64} {
  func.func @_shifted_mse_kernel(%arg0: i32, %arg1: memref<32x128xf32, #tpu.memory_space<vmem>>, %arg2: memref<1x128xf32, #tpu.memory_space<vmem>>) attributes {dimension_semantics = [#tpu.dimension_semantics<parallel>], iteration_bounds = array<i64: 1>, scalar_prefetch = 0 : i64, scratch_operands = 0 : i64, tpu.core_type = #tpu.core_type<tc>, window_params = [{transform_indices = @transform_0, window_bounds = array<i64: 32, 128>}, {transform_indices = @transform_1, window_bounds = array<i64: 1, 128>}]} {
    %c0_i32 = arith.constant 0 : i32
    %0 = arith.cmpi eq, %arg0, %c0_i32 : i32
    %true = arith.constant true
    %1 = arith.xori %0, %true : i1
    %2 = arith.extui %1 : i1 to i32
    %c0_i32_0 = arith.constant 0 : i32
    %3 = arith.cmpi ne, %2, %c0_i32_0 : i32
    scf.if %3 {
      %cst = arith.constant 0.000000e+00 : f32
      %6 = vector.broadcast %cst : f32 to vector<1x128xf32>
      %c0 = arith.constant 0 : index
      %c0_2 = arith.constant 0 : index
      %7 = vector.load %arg1[%c0, %c0_2] : memref<32x128xf32, #tpu.memory_space<vmem>>, vector<28x128xf32>
      %c4 = arith.constant 4 : index
      %c0_3 = arith.constant 0 : index
      %8 = vector.load %arg1[%c4, %c0_3] : memref<32x128xf32, #tpu.memory_space<vmem>>, vector<28x128xf32>
      %9 = arith.subf %7, %8 : vector<28x128xf32>
      %10 = arith.mulf %9, %9 : vector<28x128xf32>
      %cst_4 = arith.constant dense<0.000000e+00> : vector<128xf32>
      %11 = vector.multi_reduction <add>, %10, %cst_4 [0] : vector<28x128xf32> to vector<128xf32>
      %12 = vector.shape_cast %11 : vector<128xf32> to vector<1x128xf32>
      %13 = arith.addf %6, %12 : vector<1x128xf32>
      %c0_5 = arith.constant 0 : index
      %c0_6 = arith.constant 0 : index
      %14 = vector.load %arg2[%c0_5, %c0_6] : memref<1x128xf32, #tpu.memory_space<vmem>>, vector<1x128xf32>
      tpu.vector_store %arg2[%c0_5, %c0_6], %13 {strides = array<i32>} : memref<1x128xf32, #tpu.memory_space<vmem>>, vector<1x128xf32>,
    } else {
    }
    %4 = arith.extui %0 : i1 to i32
    %c0_i32_1 = arith.constant 0 : i32
    %5 = arith.cmpi ne, %4, %c0_i32_1 : i32
    scf.if %5 {
      %c32_i32 = arith.constant 32 : i32
      %6 = arith.muli %arg0, %c32_i32 : i32
      %cst = arith.constant 0.000000e+00 : f32
      %7 = vector.broadcast %cst : f32 to vector<1x128xf32>
      %c0 = arith.constant 0 : index
      %c0_2 = arith.constant 0 : index
      %8 = vector.load %arg1[%c0, %c0_2] : memref<32x128xf32, #tpu.memory_space<vmem>>, vector<28x128xf32>
      %c4 = arith.constant 4 : index
      %c0_3 = arith.constant 0 : index
      %9 = vector.load %arg1[%c4, %c0_3] : memref<32x128xf32, #tpu.memory_space<vmem>>, vector<28x128xf32>
      %10 = arith.subf %8, %9 : vector<28x128xf32>
      %11 = tpu.iota {dimensions = array<i32: 0>} : vector<28x128xi32>
      %12 = vector.broadcast %6 : i32 to vector<28x128xi32>
      %13 = arith.addi %11, %12 : vector<28x128xi32>
      %c0_i32_4 = arith.constant 0 : i32
      %14 = vector.broadcast %c0_i32_4 : i32 to vector<28x128xi32>
      %15 = arith.addi %13, %14 : vector<28x128xi32>
      %c28_i32 = arith.constant 28 : i32
      %16 = vector.broadcast %c28_i32 : i32 to vector<28x128xi32>
      %17 = arith.cmpi slt, %15, %16 : vector<28x128xi32>
      %cst_5 = arith.constant 0.000000e+00 : f32
      %18 = vector.broadcast %cst_5 : f32 to vector<28x128xf32>
      %19 = arith.select %17, %10, %18 : vector<28x128xi1>, vector<28x128xf32>
      %20 = arith.mulf %19, %19 : vector<28x128xf32>
      %cst_6 = arith.constant dense<0.000000e+00> : vector<128xf32>
      %21 = vector.multi_reduction <add>, %20, %cst_6 [0] : vector<28x128xf32> to vector<128xf32>
      %22 = vector.shape_cast %21 : vector<128xf32> to vector<1x128xf32>
      %23 = arith.addf %7, %22 : vector<1x128xf32>
      %c0_7 = arith.constant 0 : index
      %c0_8 = arith.constant 0 : index
      %24 = vector.load %arg2[%c0_7, %c0_8] : memref<1x128xf32, #tpu.memory_space<vmem>>, vector<1x128xf32>
      tpu.vector_store %arg2[%c0_7, %c0_8], %23 {strides = array<i32>} : memref<1x128xf32, #tpu.memory_space<vmem>>, vector<1x128xf32>,
    } else {
    }
    return
  }
  func.func @transform_0(%arg0: i32) -> (i32, i32) {
    %c0_i32 = arith.constant 0 : i32
    %c0_i32_0 = arith.constant 0 : i32
    return %arg0, %c0_i32 : i32, i32
  }
  func.func @transform_1(%arg0: i32) -> (i32, i32) {
    %c0_i32 = arith.constant 0 : i32
    %c0_i32_0 = arith.constant 0 : i32
    return %arg0, %c0_i32 : i32, i32
  }
}

</mosaic_0001>

<llo_original>
// kernel: tpu_custom_call.1
$region0: #{tpu_custom_call.1}
  #allocation0 [shape = 'u32[]', space=smem, size = 0x4, offset = 0x4, fixed_abs, tag = 'smem constant byte address 0x4 - core index']
  #allocation1 [shape = 'u32[144,128]{1,0:T(1,128)}', space=vmem, size = 0x12000, scoped, tag = 'internal scratch']
  %s0 = inlined_call_operand.hbm [shape: f32[32,128], index: 0, kind: input, shape index: {}]
  %s1 = inlined_call_operand.hbm [shape: f32[1,128], index: 1, kind: output, shape index: {}]
  %s2 = sld [smem:[#allocation0]]
  $region26: #{tpu_custom_call.1} parent=0
    _
  %s4 = ssub.s32 1, %s2
  %s5 = scalar_select 0, %s4, %s2
  $region1: #{tpu_custom_call.1} parent=0
    #allocation2 [shape = 'u8[16384]{0}', space=vmem, size = 0x4000, scoped, tag = 'input window, operand 0, single buffered']
    #allocation3 [shape = 's32[1]{0}', space=sflag, size = 0x4, scoped, tag = 'scoped memory for tpu_custom_call.1']
    #allocation4 [shape = 's32[1]{0}', space=sflag, size = 0x4, scoped, tag = 'scoped memory for tpu_custom_call.1']
    #allocation5 [shape = 'u8[512]{0}', space=vmem, size = 0x400, scoped, tag = 'output window, operand 0, single buffered']
    %6 = vsyncpa [#allocation3], 0
    %7 = vsyncpa [#allocation4], 0
    // Predicated region
    $region2: #{tpu_custom_call.1} parent=1 // pred_check
      _
    $region3: #{tpu_custom_call.1} parent=1 // pred_check_branch
      %9 = sbr.rel (0) target = $region5
    $region4: #{tpu_custom_call.1} parent=1 // pred_region
      %s11 = ssub.s32 512, 512
      %12 = vsyncadd [#allocation3], %s11
      %s13 = sshll.u32 [#allocation2], 4
      %s14 = int_to_ptr.vmem [resolvable:$true] %s13
      %19 = dma.hbm_to_vmem [thread:$0]  %s0, 512, %s14, [#allocation3], 128, 128, 8
    $region5: #{tpu_custom_call.1} parent=1 // pred_fallthru
      _
    // Predicated region
    $region6: #{tpu_custom_call.1} parent=1 // pred_check
      _
    $region7: #{tpu_custom_call.1} parent=1 // pred_check_branch
      %21 = sbr.rel (0) target = $region9
    $region8: #{tpu_custom_call.1} parent=1 // pred_region
      %22 = dma.done [#allocation3], 512
    $region9: #{tpu_custom_call.1} parent=1 // pred_fallthru
      _
    %p23 = scmp.eq.s32.totalorder 0, 0
    %p24 = scmp.ne.s32.totalorder 0, 0
    // Predicated region
    $region10: #{tpu_custom_call.1} parent=1 // pred_check
      %p25 = pneg %p24
    $region11: #{tpu_custom_call.1} parent=1 // pred_check_branch
      %27 = sbr.rel (%p25) target = $region13
    $region12: #{tpu_custom_call.1} parent=1 // pred_region
      %v28 = vld [vmem:[#allocation2] sm:$0xff]
      %v29 = vld [vmem:[#allocation2 + $0x8] sm:$0xff]
      %v30 = vld [vmem:[#allocation2 + $0x10] sm:$0xff]
      %v31 = vld [vmem:[#allocation2 + $0x18] sm:$0xf]
      %v32 = vld [vmem:[#allocation2 + $0x4] sm:$0xff]
      %v33 = vld [vmem:[#allocation2 + $0xc] sm:$0xff]
      %v34 = vld [vmem:[#allocation2 + $0x14] sm:$0xff]
      %v35 = vld [vmem:[#allocation2 + $0x1c] sm:$0xf]
      %v36 = vsub.f32 %v28, %v32
      %v37 = vsub.f32 %v29, %v33
      %v38 = vsub.f32 %v30, %v34
      %v39 = vsub.f32 %v31, %v35
      %v40 = vmul.f32 %v36, %v36
      %v41 = vmul.f32 %v37, %v37
      %v42 = vmul.f32 %v38, %v38
      %v43 = vmul.f32 %v39, %v39
      %v44 = vadd.f32 %v40, %v41
      %v45 = vadd.f32 %v44, %v42
      %vm46 = vcmask 1043456
      %v47 = vsel %vm46, %v43, 0.0
      %v48 = vadd.f32 %v45, %v47
      %v49 = vrot.slane %v48, 4
      %v50 = vadd.f32 %v48, %v49
      %v51 = vrot.slane %v50, 2
      %v52 = vadd.f32 %v50, %v51
      %v53 = vrot.slane %v52, 1
      %v54 = vadd.f32 %v52, %v53
      %v55 = vadd.f32 %v54, 0.0
      %56 = vst [vmem:[#allocation5] sm:$0x1] %v55
    $region13: #{tpu_custom_call.1} parent=1 // pred_fallthru
      _
    // Predicated region
    $region14: #{tpu_custom_call.1} parent=1 // pred_check
      %p57 = pneg %p23
    $region15: #{tpu_custom_call.1} parent=1 // pred_check_branch
      %59 = sbr.rel (%p57) target = $region17
    $region16: #{tpu_custom_call.1} parent=1 // pred_region
      %s60 = smul.u32 0, 32
      %v61 = vld [vmem:[#allocation2] sm:$0xff]
      %v62 = vld [vmem:[#allocation2 + $0x8] sm:$0xff]
      %v63 = vld [vmem:[#allocation2 + $0x10] sm:$0xff]
      %v64 = vld [vmem:[#allocation2 + $0x18] sm:$0xf]
      %v65 = vld [vmem:[#allocation2 + $0x4] sm:$0xff]
      %v66 = vld [vmem:[#allocation2 + $0xc] sm:$0xff]
      %v67 = vld [vmem:[#allocation2 + $0x14] sm:$0xff]
      %v68 = vld [vmem:[#allocation2 + $0x1c] sm:$0xf]
      %v69 = vsub.f32 %v61, %v65
      %v70 = vsub.f32 %v62, %v66
      %v71 = vsub.f32 %v63, %v67
      %v72 = vsub.f32 %v64, %v68
      %v73 = vlaneseq
      %v74 = vshrl.u32 %v73, 7
      %v75 = vadd.s32 %v74, 8
      %v76 = vadd.s32 %v74, 16
      %v77 = vadd.s32 %v74, 24
      %v78 = vstv %s60
      %v79 = vadd.s32 %v74, %v78
      %v80 = vadd.s32 %v75, %v78
      %v81 = vadd.s32 %v76, %v78
      %v82 = vadd.s32 %v77, %v78
      %vm83 = vcmp.lt.s32.totalorder %v79, 28
      %vm84 = vcmp.lt.s32.totalorder %v80, 28
      %vm85 = vcmp.lt.s32.totalorder %v81, 28
      %vm86 = vcmp.lt.s32.totalorder %v82, 28
      %v87 = vsel %vm83, %v69, 0.0
      %v88 = vsel %vm84, %v70, 0.0
      %v89 = vsel %vm85, %v71, 0.0
      %v90 = vsel %vm86, %v72, 0.0
      %v91 = vmul.f32 %v87, %v87
      %v92 = vmul.f32 %v88, %v88
      %v93 = vmul.f32 %v89, %v89
      %v94 = vmul.f32 %v90, %v90
      %v95 = vadd.f32 %v91, %v92
      %v96 = vadd.f32 %v95, %v93
      %vm97 = vcmask 1043456
      %v98 = vsel %vm97, %v94, 0.0
      %v99 = vadd.f32 %v96, %v98
      %v100 = vrot.slane %v99, 4
      %v101 = vadd.f32 %v99, %v100
      %v102 = vrot.slane %v101, 2
      %v103 = vadd.f32 %v101, %v102
      %v104 = vrot.slane %v103, 1
      %v105 = vadd.f32 %v103, %v104
      %v106 = vadd.f32 %v105, 0.0
      %107 = vst [vmem:[#allocation5] sm:$0x1] %v106
    $region17: #{tpu_custom_call.1} parent=1 // pred_fallthru
      _
    // Predicated region
    $region18: #{tpu_custom_call.1} parent=1 // pred_check
      _
    $region19: #{tpu_custom_call.1} parent=1 // pred_check_branch
      %109 = sbr.rel (0) target = $region21
    $region20: #{tpu_custom_call.1} parent=1 // pred_region
      %s111 = ssub.s32 16, 16
      %112 = vsyncadd [#allocation4], %s111
      %s114 = sshll.u32 [#allocation5], 4
      %s115 = int_to_ptr.vmem [resolvable:$true] %s114
      %117 = dma.vmem_to_hbm [thread:$0]  %s115, 16, %s1, [#allocation4]
    $region21: #{tpu_custom_call.1} parent=1 // pred_fallthru
      _
    // Predicated region
    $region22: #{tpu_custom_call.1} parent=1 // pred_check
      _
    $region23: #{tpu_custom_call.1} parent=1 // pred_check_branch
      %119 = sbr.rel (0) target = $region25
    $region24: #{tpu_custom_call.1} parent=1 // pred_region
      %120 = dma.done [#allocation4], 16
    $region25: #{tpu_custom_call.1} parent=1 // pred_fallthru
      _
    %121 = vsyncpa [#allocation3], 1
    %122 = vsyncpa [#allocation4], 1

</llo_original>
